<compile_context>
chip_gen: v5e
topology: v5e:2x2
jax: 0.10.0
libtpu: 0.0.40
codegen_flags: <defaults>
</compile_context>

<pallas_src>
import functools

import jax
import jax.numpy as jnp
from jax import lax
from jax.experimental import pallas as pl
from jax.experimental.pallas import tpu as pltpu

SOFT_PLUS_BETA = 20.0
EPSILON_MARGIN = 1e-16

# Tile sizes (f32 output): 512*1024*4 B = 2 MiB per output tile, ~4 MiB double
# buffered, plus tiny augmented-feature tiles -> well under the 32 MiB scoped
# VMEM default on v5e/v6e/v7x.
_TM = 512    # output sublane axis (multiple of 8)
_TN = 1024   # output lane axis (multiple of 128 -> unmasked vst on full tiles)


def lower_bounded(raw):
    """JAX equivalent of lower_bounded_tensor: softplus(raw, beta=20) + eps."""
    return jax.nn.softplus(SOFT_PLUS_BETA * raw) / SOFT_PLUS_BETA + EPSILON_MARGIN


def _expo_rbf_kernel(sigma_p_ref, xa_ref, ya_ref, o_ref, *, neg_half_p):
    """One grid step: N-tile im, M-tile jn, output dim j.

    sigma_p_ref: (ny,)        SMEM  -- sigma_j ** p (scalar prefetch)
    xa_ref:      (1, tm, K)   VMEM  -- augmented x rows [-2*x/l_j, ||x/l_j||^2, 1]
    ya_ref:      (1, tn, K)   VMEM  -- augmented y rows [ y/l_j,  1, ||y/l_j||^2]
    o_ref:       (1, tm, tn)  VMEM  -- K(x, y)[j] ** p
    """
    j = pl.program_id(2)
    # A single MXU matmul yields d2 = ||xs||^2 + ||ys||^2 - 2 xs.ys directly
    # (the norm terms ride along as augmented feature columns).
    d2 = lax.dot_general(
        xa_ref[0], ya_ref[0],
        dimension_numbers=(((1,), (1,)), ((), ())),
        precision=lax.Precision.HIGHEST,   # K = nx + 2 is tiny; MXU is idle anyway
        preferred_element_type=jnp.float32,
    )
    d2 = jnp.maximum(d2, 0.0)
    # k**p = sigma**p * exp(-0.5 * p * d2)  -- single EUP exp per element.
    o_ref[0] = (sigma_p_ref[j] * jnp.exp(neg_half_p * d2)).astype(o_ref.dtype)


def exponentiation_forward(x, y, theta_raw, exponent, diag=False,
                           out_dtype=jnp.float32):
    """Pallas forward of Exponentiation(RBF(theta_raw), exponent).

    x: (N, nx), y: (M, nx), theta_raw: (ny, 1 + nx) raw [sigma | lengthscales].
    Returns (ny, N, M).
    """
    if diag:
        # TODO(synk): diag=True path (per-sample k(x_i, x_i)) not implemented.
        raise NotImplementedError("diag=True not supported in this kernel")

    N, nx = x.shape
    M, nx2 = y.shape
    assert nx == nx2, "wrong dimension."
    ny = theta_raw.shape[0]
    p = float(exponent)

    sigma = lower_bounded(theta_raw[:, 0])                    # (ny,)
    inv_l = 1.0 / lower_bounded(theta_raw[:, 1:])             # (ny, nx)
    sigma_p = (sigma ** p).astype(jnp.float32)                # (ny,) -> SMEM

    # Tile sizes: full extent for small dims (single exact block), fixed large
    # tiles for big dims (amortizes the ~0.35 us per-grid-step overhead).
    tm = N if N <= _TM else _TM
    tn = M if M <= _TN else _TN
    n_im = pl.cdiv(N, tm)
    n_jn = pl.cdiv(M, tn)
    N_pad = n_im * tm
    M_pad = n_jn * tn

    # Inputs are tiny (ny*(N+M)*(nx+2) elements) -- pad them to tile multiples
    # so boundary tiles are deterministic. The OUTPUT is NOT padded.
    x32 = x.astype(jnp.float32)
    y32 = y.astype(jnp.float32)
    if N_pad != N:
        x32 = jnp.pad(x32, ((0, N_pad - N), (0, 0)))
    if M_pad != M:
        y32 = jnp.pad(y32, ((0, M_pad - M), (0, 0)))

    # Hoisted per-j scaling + norms, folded into augmented features so the
    # kernel needs exactly one matmul per tile.
    xs = x32[None, :, :] * inv_l[:, None, :]                  # (ny, N_pad, nx)
    ys = y32[None, :, :] * inv_l[:, None, :]                  # (ny, M_pad, nx)
    xx = jnp.sum(xs * xs, axis=-1, keepdims=True)             # (ny, N_pad, 1)
    yy = jnp.sum(ys * ys, axis=-1, keepdims=True)             # (ny, M_pad, 1)
    ones_x = jnp.ones((ny, N_pad, 1), jnp.float32)
    ones_y = jnp.ones((ny, M_pad, 1), jnp.float32)
    xa = jnp.concatenate([-2.0 * xs, xx, ones_x], axis=-1)    # (ny, N_pad, nx+2)
    ya = jnp.concatenate([ys, ones_y, yy], axis=-1)           # (ny, M_pad, nx+2)
    K = nx + 2

    kernel = functools.partial(_expo_rbf_kernel, neg_half_p=-0.5 * p)

    out = pl.pallas_call(
        kernel,
        # Natural output shape; Pallas masks ragged boundary stores, so there
        # is no pad-then-slice round trip on the HBM-write-bound buffer.
        out_shape=jax.ShapeDtypeStruct((ny, N, M), out_dtype),
        grid_spec=pltpu.PrefetchScalarGridSpec(
            num_scalar_prefetch=1,
            # N-tile axis leads so megacore sharding still kicks in when ny == 1.
            grid=(n_im, n_jn, ny),
            in_specs=[
                pl.BlockSpec((1, tm, K), lambda im, jn, j, sp: (j, im, 0)),
                pl.BlockSpec((1, tn, K), lambda im, jn, j, sp: (j, jn, 0)),
            ],
            out_specs=pl.BlockSpec((1, tm, tn), lambda im, jn, j, sp: (j, im, jn)),
        ),
        compiler_params=pltpu.CompilerParams(
            dimension_semantics=("parallel", "parallel", "parallel")),
    )(sigma_p, xa, ya)

    return out


def reference_forward(x, y, theta_raw, exponent):
    """Pure-JAX reference (mirrors the PyTorch Exponentiation forward)."""
    sigma = lower_bounded(theta_raw[:, 0:1])                  # (ny, 1)
    l = lower_bounded(theta_raw[:, 1:])                       # (ny, nx)
    diff = x[None, :, None, :] - y[None, None, :, :]          # (1, N, M, nx)
    scaled = diff / l[:, None, None, :]                       # (ny, N, M, nx)
    d2 = jnp.sum(scaled ** 2, axis=-1)                        # (ny, N, M)
    k = sigma[:, :, None] * jnp.exp(-0.5 * d2)
    return k ** exponent


if __name__ == "__main__":
    key = jax.random.PRNGKey(0)
    kx, ky, kt = jax.random.split(key, 3)

    # Small deterministic setup: N=M=16 samples, nx=4 input dims, ny=2 output dims.
    N, M, nx, ny = 16, 16, 4, 2
    exponent_factor = 2.0  # fixed, non-learnable exponent (as in the module)

    x = jax.random.normal(kx, (N, nx), dtype=jnp.float32)
    y = jax.random.normal(ky, (M, nx), dtype=jnp.float32)
    # Raw RBF parameters (sigma_raw | lengthscale_raw), deterministic init.
    theta_raw = 0.5 + 0.1 * jax.random.normal(kt, (ny, 1 + nx), dtype=jnp.float32)

    out = exponentiation_forward(x, y, theta_raw, exponent_factor)
    out = jax.block_until_ready(out)
    ref = reference_forward(x, y, theta_raw, exponent_factor)
    assert out.shape == (ny, N, M)
    assert jnp.allclose(out, ref, rtol=1e-3, atol=1e-4), "mismatch vs reference"

    # Ragged-shape check (exercises masked boundary stores and ny == 1 path).
    N2, M2, ny2 = 600, 1300, 1
    kx2, ky2, kt2 = jax.random.split(jax.random.PRNGKey(1), 3)
    x2 = jax.random.normal(kx2, (N2, nx), dtype=jnp.float32)
    y2 = jax.random.normal(ky2, (M2, nx), dtype=jnp.float32)
    theta2 = 0.5 + 0.1 * jax.random.normal(kt2, (ny2, 1 + nx), dtype=jnp.float32)
    out2 = jax.block_until_ready(
        exponentiation_forward(x2, y2, theta2, exponent_factor))
    ref2 = reference_forward(x2, y2, theta2, exponent_factor)
    assert out2.shape == (ny2, N2, M2)
    assert jnp.allclose(out2, ref2, rtol=1e-3, atol=1e-4), "mismatch vs reference (ragged)"

    print("KERNEL_OK")
</pallas_src>

<mosaic_0001>
module attributes {stable_mosaic.version = 11 : i64} {
  func.func @_expo_rbf_kernel(%arg0: i32, %arg1: i32, %arg2: i32, %arg3: memref<2xf32, #tpu.memory_space<smem>>, %arg4: memref<1x16x6xf32, #tpu.memory_space<vmem>>, %arg5: memref<1x16x6xf32, #tpu.memory_space<vmem>>, %arg6: memref<1x16x16xf32, #tpu.memory_space<vmem>>) attributes {dimension_semantics = [#tpu.dimension_semantics<parallel>, #tpu.dimension_semantics<parallel>, #tpu.dimension_semantics<parallel>], iteration_bounds = array<i64: 1, 1, 2>, scalar_prefetch = 1 : i64, scratch_operands = 0 : i64, tpu.core_type = #tpu.core_type<tc>, window_params = [{transform_indices = @transform_0, window_bounds = array<i64: 1, 16, 6>}, {transform_indices = @transform_1, window_bounds = array<i64: 1, 16, 6>}, {transform_indices = @transform_2, window_bounds = array<i64: 1, 16, 16>}]} {
    %c0 = arith.constant 0 : index
    %c0_0 = arith.constant 0 : index
    %c0_1 = arith.constant 0 : index
    %0 = vector.load %arg4[%c0, %c0_0, %c0_1] : memref<1x16x6xf32, #tpu.memory_space<vmem>>, vector<1x16x6xf32>
    %1 = vector.shape_cast %0 : vector<1x16x6xf32> to vector<16x6xf32>
    %c0_2 = arith.constant 0 : index
    %c0_3 = arith.constant 0 : index
    %c0_4 = arith.constant 0 : index
    %2 = vector.load %arg5[%c0_2, %c0_3, %c0_4] : memref<1x16x6xf32, #tpu.memory_space<vmem>>, vector<1x16x6xf32>
    %3 = vector.shape_cast %2 : vector<1x16x6xf32> to vector<16x6xf32>
    %cst = arith.constant dense<0.000000e+00> : vector<16x16xf32>
    %4 = tpu.matmul %1, %3, %cst {dimension_numbers = #tpu.dot_dimension_numbers<[1], [1], [0], [0], [0, 0, 1, 0], [], []>, precision = #tpu.contract_precision<fp32>} : vector<16x6xf32>, vector<16x6xf32>, vector<16x16xf32> -> vector<16x16xf32>
    %cst_5 = arith.constant 0.000000e+00 : f32
    %5 = vector.broadcast %cst_5 : f32 to vector<16x16xf32>
    %6 = arith.maximumf %4, %5 : vector<16x16xf32>
    %7 = arith.index_cast %arg2 : i32 to index
    %8 = memref.load %arg3[%7] : memref<2xf32, #tpu.memory_space<smem>>
    %cst_6 = arith.constant -1.000000e+00 : f32
    %9 = vector.broadcast %cst_6 : f32 to vector<16x16xf32>
    %10 = arith.mulf %9, %6 : vector<16x16xf32>
    %11 = math.exp %10 : vector<16x16xf32>
    %12 = vector.broadcast %8 : f32 to vector<16x16xf32>
    %13 = arith.mulf %12, %11 : vector<16x16xf32>
    %c0_7 = arith.constant 0 : index
    %c0_8 = arith.constant 0 : index
    %c0_9 = arith.constant 0 : index
    %14 = vector.load %arg6[%c0_7, %c0_8, %c0_9] : memref<1x16x16xf32, #tpu.memory_space<vmem>>, vector<1x16x16xf32>
    %15 = vector.shape_cast %14 : vector<1x16x16xf32> to vector<16x16xf32>
    %16 = vector.shape_cast %13 : vector<16x16xf32> to vector<1x16x16xf32>
    tpu.vector_store %arg6[%c0_7, %c0_8, %c0_9], %16 {strides = array<i32>} : memref<1x16x16xf32, #tpu.memory_space<vmem>>, vector<1x16x16xf32>,
    return
  }
  func.func @transform_0(%arg0: i32, %arg1: i32, %arg2: i32, %arg3: memref<2xf32, #tpu.memory_space<smem>>) -> (i32, i32, i32) {
    %c0_i32 = arith.constant 0 : i32
    %c0_i32_0 = arith.constant 0 : i32
    return %arg2, %arg0, %c0_i32 : i32, i32, i32
  }
  func.func @transform_1(%arg0: i32, %arg1: i32, %arg2: i32, %arg3: memref<2xf32, #tpu.memory_space<smem>>) -> (i32, i32, i32) {
    %c0_i32 = arith.constant 0 : i32
    %c0_i32_0 = arith.constant 0 : i32
    return %arg2, %arg1, %c0_i32 : i32, i32, i32
  }
  func.func @transform_2(%arg0: i32, %arg1: i32, %arg2: i32, %arg3: memref<2xf32, #tpu.memory_space<smem>>) -> (i32, i32, i32) {
    %c0_i32 = arith.constant 0 : i32
    return %arg2, %arg0, %arg1 : i32, i32, i32
  }
}

</mosaic_0001>

<llo_original>
// kernel: tpu_custom_call.1
$region0: #{tpu_custom_call.1}
  #allocation0 [shape = 'u32[]', space=smem, size = 0x4, offset = 0x4, fixed_abs, tag = 'smem constant byte address 0x4 - core index']
  #allocation1 [shape = 'u32[72,128]{1,0:T(1,128)}', space=vmem, size = 0x9000, scoped, tag = 'internal scratch']
  #allocation2 [shape = 's32[1]{0}', space=sflag, size = 0x4, scoped, tag = 'scoped memory for tpu_custom_call.1']
  #allocation3 [shape = 'u8[512]{0}', space=smem, size = 0x200, scoped, tag = 'prefetched SMEM operand 0']
  %s0 = inlined_call_operand.vmem [shape: f32[2], index: 0, kind: input, shape index: {}]
  %s1 = inlined_call_operand.vmem [shape: f32[2,16,6], index: 1, kind: input, shape index: {}]
  %s2 = inlined_call_operand.vmem [shape: f32[2,16,6], index: 2, kind: input, shape index: {}]
  %s3 = inlined_call_operand.hbm [shape: f32[2,16,16], index: 3, kind: output, shape index: {}]
  %s4 = sld [smem:[#allocation0]]
  $region41: #{tpu_custom_call.1} parent=0
    _
  %s6 = ssub.s32 1, %s4
  %s7 = scalar_select 0, %s6, %s4
  %s9 = sshll.u32 %s0, 4
  %s10 = int_to_ptr.vmem [resolvable:$true] %s9
  %12 = dma.vmem_to_smem %s10, 16, [#allocation3], [#allocation2]
  %14 = dma.done [#allocation2], 16
  %15 = sfence
  $region1: #{tpu_custom_call.1} parent=0
    #allocation4 [shape = 'u8[16384]{0}', space=vmem, size = 0x4000, scoped, tag = 'output window, operand 0']
    #allocation5 [shape = 's32[2]{0}', space=sflag, size = 0x8, scoped, tag = 'scoped memory for tpu_custom_call.1']
    %16 = vsyncpa [#allocation5], 0
    %s17 = scalar_lea.sflag [#allocation5], 1
    %18 = vsyncpa %s17, 0
    loop: start=0, step=1, limit=4
    $region2: #{tpu_custom_call.1} parent=1 // loop_pre_header
      _
    $region3: #{tpu_custom_call.1} parent=1 // loop_header
      %s20 = sphi 0, %s24
      %p21 = scmp.ge.s32.totalorder %s20, 4
      %s27 = sphi 0, %s46
      %s28 = sphi 0, %s42
      %s29 = sphi 0, %s38
      %s30 = sphi 0, %s27
      %s31 = sphi 0, %s28
      %s32 = sphi 0, %s29
      %s33 = sphi 0, %s30
      %s34 = sphi 0, %s31
      %s35 = sphi 0, %s32
      %s51 = sphi 0, %s53
      %s54 = sphi 0, %s51
      %s55 = sphi 0, %s54
      %s71 = sphi 0, %s55
      %s79 = sphi 0, %s81
      %s82 = sphi 0, %s79
      %s83 = sphi 0, %s82
      %s99 = sphi 0, %s83
      %s109 = sphi 0, %s111
      %s112 = sphi 0, %s109
      %s113 = sphi 0, %s112
      %s129 = sphi 0, %s113
    $region4: #{tpu_custom_call.1} parent=1 // loop_header_branch
      %23 = sbr.rel (%p21) target = $region8
    $region5: #{tpu_custom_call.1} parent=1 // loop_body
      %s25 = ssub.s32 %s20, 1
      %s26 = ssub.s32 %s20, 2
      %s36 = sadd.s32 1, %s29
      %p37 = scmp.ge.s32.totalorder %s36, 2
      %s38 = scalar_select %p37, 0, %s36
      %s39 = sadd.s32 1, %s28
      %s40 = scalar_select %p37, %s39, %s28
      %p41 = scmp.ge.s32.totalorder %s40, 1
      %s42 = scalar_select %p41, 0, %s40
      %s43 = sadd.s32 1, %s27
      %s44 = scalar_select %p41, %s43, %s27
      %p45 = scmp.ge.s32.totalorder %s44, 1
      %s46 = scalar_select %p45, 0, %s44
      %s47 = ssub.s32 %s29, %s38
      %s48 = ssub.s32 %s27, %s46
      %s49 = sor.u32 %s47, %s48
      %p50 = scmp.eq.s32.totalorder %s49, 0
      %s52 = sadd.s32 %s51, 1
      %s53 = scalar_select %p50, %s51, %s52
      %p56 = pneg %p50
      %p57 = scmp.eq.s32.totalorder %s20, 1
      %p58 = por %p56, %p57
      %p59 = scmp.ne.s32.totalorder %s51, %s54
      %p60 = scmp.eq.s32.totalorder %s20, 0
      %p61 = por %p59, %p60
      %p62 = scmp.ne.s32.totalorder %s51, %s54
      %p63 = scmp.eq.s32.totalorder %s25, 1
      %p64 = por %p62, %p63
      %p65 = scmp.ne.s32.totalorder %s54, %s55
      %p66 = scmp.eq.s32.totalorder %s25, 0
      %p67 = por %p65, %p66
      %p68 = scmp.ne.s32.totalorder %s54, %s55
      %p69 = scmp.eq.s32.totalorder %s26, 1
      %p70 = por %p68, %p69
      %p72 = scmp.ne.s32.totalorder %s55, %s71
      %p73 = scmp.eq.s32.totalorder %s26, 0
      %p74 = por %p72, %p73
      %s75 = ssub.s32 %s29, %s38
      %s76 = ssub.s32 %s28, %s42
      %s77 = sor.u32 %s75, %s76
      %p78 = scmp.eq.s32.totalorder %s77, 0
      %s80 = sadd.s32 %s79, 1
      %s81 = scalar_select %p78, %s79, %s80
      %p84 = pneg %p78
      %p85 = scmp.eq.s32.totalorder %s20, 1
      %p86 = por %p84, %p85
      %p87 = scmp.ne.s32.totalorder %s79, %s82
      %p88 = scmp.eq.s32.totalorder %s20, 0
      %p89 = por %p87, %p88
      %p90 = scmp.ne.s32.totalorder %s79, %s82
      %p91 = scmp.eq.s32.totalorder %s25, 1
      %p92 = por %p90, %p91
      %p93 = scmp.ne.s32.totalorder %s82, %s83
      %p94 = scmp.eq.s32.totalorder %s25, 0
      %p95 = por %p93, %p94
      %p96 = scmp.ne.s32.totalorder %s82, %s83
      %p97 = scmp.eq.s32.totalorder %s26, 1
      %p98 = por %p96, %p97
      %p100 = scmp.ne.s32.totalorder %s83, %s99
      %p101 = scmp.eq.s32.totalorder %s26, 0
      %p102 = por %p100, %p101
      %s103 = ssub.s32 %s29, %s38
      %s104 = ssub.s32 %s27, %s46
      %s105 = sor.u32 %s103, %s104
      %s106 = ssub.s32 %s28, %s42
      %s107 = sor.u32 %s105, %s106
      %p108 = scmp.eq.s32.totalorder %s107, 0
      %s110 = sadd.s32 %s109, 1
      %s111 = scalar_select %p108, %s109, %s110
      %p114 = pneg %p108
      %p115 = scmp.eq.s32.totalorder %s20, 1
      %p116 = por %p114, %p115
      %p117 = scmp.ne.s32.totalorder %s109, %s112
      %p118 = scmp.eq.s32.totalorder %s20, 0
      %p119 = por %p117, %p118
      %p120 = scmp.ne.s32.totalorder %s109, %s112
      %p121 = scmp.eq.s32.totalorder %s25, 1
      %p122 = por %p120, %p121
      %p123 = scmp.ne.s32.totalorder %s112, %s113
      %p124 = scmp.eq.s32.totalorder %s25, 0
      %p125 = por %p123, %p124
      %p126 = scmp.ne.s32.totalorder %s112, %s113
      %p127 = scmp.eq.s32.totalorder %s26, 1
      %p128 = por %p126, %p127
      %p130 = scmp.ne.s32.totalorder %s113, %s129
      %p131 = scmp.eq.s32.totalorder %s26, 0
      %p132 = por %p130, %p131
      %p133 = scmp.le.s32.totalorder 1, %s20
      %p134 = scmp.lt.s32.totalorder %s20, 3
      %p135 = pnand %p133, %p134
      %p136 = pneg %p135
      // Predicated region
      $region9: #{tpu_custom_call.1} parent=5 // pred_check
        _
      $region10: #{tpu_custom_call.1} parent=5 // pred_check_branch
        %138 = sbr.rel (%p135) target = $region12
      $region11: #{tpu_custom_call.1} parent=5 // pred_region
        %s139 = ssub.s32 %s20, 1
      $region12: #{tpu_custom_call.1} parent=5 // pred_fallthru
        _
      %p140 = scmp.lt.s32.totalorder %s20, 2
      // Predicated region
      $region13: #{tpu_custom_call.1} parent=5 // pred_check
        %p141 = pneg %p140
      $region14: #{tpu_custom_call.1} parent=5 // pred_check_branch
        %143 = sbr.rel (%p141) target = $region16
      $region15: #{tpu_custom_call.1} parent=5 // pred_region
        // Predicated region
        $region17: #{tpu_custom_call.1} parent=15 // pred_check
          %p144 = pneg %p61
        $region18: #{tpu_custom_call.1} parent=15 // pred_check_branch
          %146 = sbr.rel (%p144) target = $region20
        $region19: #{tpu_custom_call.1} parent=15 // pred_region
          %s147 = smul.u32 2, %s27
          %p148 = scmp.lt.s32.totalorder %s29, 1
          %s149 = scalar_select %p148, %s29, 1
          %p150 = scmp.lt.s32.totalorder %s147, 1
          %s151 = scalar_select %p150, %s147, 1
          %s152 = smul.addr %s149, 2
          %s153 = sadd.s32 %s151, %s152
          %s154 = smul.addr %s153, 8
          %s155 = scalar_lea.vmem %s1, %s154
          %s156 = smul.u32 2, %s27
        $region20: #{tpu_custom_call.1} parent=15 // pred_fallthru
          _
        // Predicated region
        $region21: #{tpu_custom_call.1} parent=15 // pred_check
          %p157 = pneg %p89
        $region22: #{tpu_custom_call.1} parent=15 // pred_check_branch
          %159 = sbr.rel (%p157) target = $region24
        $region23: #{tpu_custom_call.1} parent=15 // pred_region
          %s160 = smul.u32 2, %s28
          %p161 = scmp.lt.s32.totalorder %s29, 1
          %s162 = scalar_select %p161, %s29, 1
          %p163 = scmp.lt.s32.totalorder %s160, 1
          %s164 = scalar_select %p163, %s160, 1
          %s165 = smul.addr %s162, 2
          %s166 = sadd.s32 %s164, %s165
          %s167 = smul.addr %s166, 8
          %s168 = scalar_lea.vmem %s2, %s167
          %s169 = smul.u32 2, %s28
        $region24: #{tpu_custom_call.1} parent=15 // pred_fallthru
          _
      $region16: #{tpu_custom_call.1} parent=5 // pred_fallthru
        _
      %p170 = scmp.le.s32.totalorder 1, %s20
      %p171 = scmp.lt.s32.totalorder %s20, 3
      %p172 = pnand %p170, %p171
      %p173 = pneg %p172
      // Predicated region
      $region25: #{tpu_custom_call.1} parent=5 // pred_check
        _
      $region26: #{tpu_custom_call.1} parent=5 // pred_check_branch
        %175 = sbr.rel (%p172) target = $region28
      $region27: #{tpu_custom_call.1} parent=5 // pred_region
        %s176 = ssub.s32 %s20, 1
        %s177 = smul.u32 2, %s30
        %p178 = scmp.lt.s32.totalorder %s32, 1
        %s179 = scalar_select %p178, %s32, 1
        %p180 = scmp.lt.s32.totalorder %s177, 1
        %s181 = scalar_select %p180, %s177, 1
        %s182 = smul.addr %s179, 2
        %s183 = sadd.s32 %s181, %s182
        %s184 = smul.addr %s183, 8
        %s185 = scalar_lea.vmem %s1, %s184
        %p186 = pneg %p67
        %p187 = pneg %p64
        %s188 = smul.u32 2, %s31
        %p189 = scmp.lt.s32.totalorder %s32, 1
        %s190 = scalar_select %p189, %s32, 1
        %p191 = scmp.lt.s32.totalorder %s188, 1
        %s192 = scalar_select %p191, %s188, 1
        %s193 = smul.addr %s190, 2
        %s194 = sadd.s32 %s192, %s193
        %s195 = smul.addr %s194, 8
        %s196 = scalar_lea.vmem %s2, %s195
        %p197 = pneg %p95
        %p198 = pneg %p92
        %p199 = pneg %p125
        %p200 = pneg %p122
        %s201 = sand.u32 %s112, 1
        %s202 = scalar_lea.sflag [#allocation5], %s201
        %s203 = sand.u32 %s112, 1
        %s204 = smul.addr %s203, 16
        %s205 = scalar_lea.vmem [#allocation4], %s204
        %s206 = smul.u32 2, %s30
        %p207 = scmp.lt.s32.totalorder %s32, 1
        %s208 = scalar_select %p207, %s32, 1
        %p209 = scmp.lt.s32.totalorder %s206, 1
        %s210 = scalar_select %p209, %s206, 1
        %s211 = smul.addr %s208, 2
        %s212 = sadd.s32 %s210, %s211
        %s213 = smul.addr %s212, 8
        %s214 = scalar_lea.vmem %s1, %s213
        %s215 = smul.u32 2, %s30
        %s216 = smul.u32 2, %s31
        %p217 = scmp.lt.s32.totalorder %s32, 1
        %s218 = scalar_select %p217, %s32, 1
        %p219 = scmp.lt.s32.totalorder %s216, 1
        %s220 = scalar_select %p219, %s216, 1
        %s221 = smul.addr %s218, 2
        %s222 = sadd.s32 %s220, %s221
        %s223 = smul.addr %s222, 8
        %s224 = scalar_lea.vmem %s2, %s223
        %s225 = smul.u32 2, %s31
        %s226 = smul.u32 2, %s30
        %v227 = vld [vmem:[%s214] sm:$0xff]
        %v228 = vld [vmem:[%s214 + $0x8] sm:$0xff]
        %v229 = vld [vmem:[%s224] sm:$0xff]
        %v230 = vld [vmem:[%s224 + $0x8] sm:$0xff]
        %vm231 = vcmask 48128
        %v233 = vsel %vm231, %v227, 0
        %v236 = vsel %vm231, %v228, 0
        %v239 = vsel %vm231, %v229, 0
        %v242 = vsel %vm231, %v230, 0
        %244 = vmatpush.xpose.msra.mxu0 0.0
        %245 = vmatpush.xpose.msra.mxu0 0.0
        %246 = vmatpush.xpose.msra.mxu0 0.0
        %247 = vmatpush.xpose.msra.mxu0 0.0
        %248 = vmatpush.xpose.msra.mxu0 0.0
        %249 = vmatpush.xpose.msra.mxu0 0.0
        %250 = vmatpush.xpose.msra.mxu0 0.0
        %251 = vmatpush.xpose.msra.mxu0 0.0
        %252 = vmatpush.xpose.msra.mxu0 0.0
        %253 = vmatpush.xpose.msra.mxu0 0.0
        %254 = vmatpush.xpose.msra.mxu0 0.0
        %255 = vmatpush.xpose.msra.mxu0 0.0
        %256 = vmatpush.xpose.msra.mxu0 0.0
        %257 = vmatpush.xpose.msra.mxu0 0.0
        %v258 = vand.u32 %v242, 4294901760
        %259 = vmatpush.xpose.msra.mxu0 %v258
        %v260 = vand.u32 %v239, 4294901760
        %261 = vmatpush.xpose.msra.mxu0 %v260
        %v262 = vand.u32 %v233, 4294901760
        %v263 = vsub.f32 %v233, %v262
        %v264 = vand.u32 %v263, 4294901760
        %v265 = vsub.f32 %v263, %v264
        %v266 = vand.u32 %v265, 4294901760
        %267 = vmatmul.f32.gmra.mxu0 %v266
        %v268 = vpop.f32.mrf.mxu0
        %v269 = vadd.f32 0.0, %v268
        %v270 = vand.u32 %v236, 4294901760
        %v271 = vsub.f32 %v236, %v270
        %v272 = vand.u32 %v271, 4294901760
        %v273 = vsub.f32 %v271, %v272
        %v274 = vand.u32 %v273, 4294901760
        %275 = vmatmul.f32.gmra.mxu0 %v274
        %v276 = vpop.f32.mrf.mxu0
        %v277 = vadd.f32 0.0, %v276
        %278 = vdwg.mxu0
        %279 = vmatpush.xpose.msra.mxu0 0.0
        %280 = vmatpush.xpose.msra.mxu0 0.0
        %281 = vmatpush.xpose.msra.mxu0 0.0
        %282 = vmatpush.xpose.msra.mxu0 0.0
        %283 = vmatpush.xpose.msra.mxu0 0.0
        %284 = vmatpush.xpose.msra.mxu0 0.0
        %285 = vmatpush.xpose.msra.mxu0 0.0
        %286 = vmatpush.xpose.msra.mxu0 0.0
        %287 = vmatpush.xpose.msra.mxu0 0.0
        %288 = vmatpush.xpose.msra.mxu0 0.0
        %289 = vmatpush.xpose.msra.mxu0 0.0
        %290 = vmatpush.xpose.msra.mxu0 0.0
        %291 = vmatpush.xpose.msra.mxu0 0.0
        %292 = vmatpush.xpose.msra.mxu0 0.0
        %v293 = vand.u32 %v242, 4294901760
        %v294 = vsub.f32 %v242, %v293
        %v295 = vand.u32 %v294, 4294901760
        %v296 = vsub.f32 %v294, %v295
        %v297 = vand.u32 %v296, 4294901760
        %298 = vmatpush.xpose.msra.mxu0 %v297
        %v299 = vand.u32 %v239, 4294901760
        %v300 = vsub.f32 %v239, %v299
        %v301 = vand.u32 %v300, 4294901760
        %v302 = vsub.f32 %v300, %v301
        %v303 = vand.u32 %v302, 4294901760
        %304 = vmatpush.xpose.msra.mxu0 %v303
        %v305 = vand.u32 %v233, 4294901760
        %306 = vmatmul.f32.gmra.mxu0 %v305
        %v307 = vpop.f32.mrf.mxu0
        %v308 = vadd.f32 %v269, %v307
        %v309 = vand.u32 %v236, 4294901760
        %310 = vmatmul.f32.gmra.mxu0 %v309
        %v311 = vpop.f32.mrf.mxu0
        %v312 = vadd.f32 %v277, %v311
        %313 = vdwg.mxu0
        %314 = vmatpush.xpose.msra.mxu0 0.0
        %315 = vmatpush.xpose.msra.mxu0 0.0
        %316 = vmatpush.xpose.msra.mxu0 0.0
        %317 = vmatpush.xpose.msra.mxu0 0.0
        %318 = vmatpush.xpose.msra.mxu0 0.0
        %319 = vmatpush.xpose.msra.mxu0 0.0
        %320 = vmatpush.xpose.msra.mxu0 0.0
        %321 = vmatpush.xpose.msra.mxu0 0.0
        %322 = vmatpush.xpose.msra.mxu0 0.0
        %323 = vmatpush.xpose.msra.mxu0 0.0
        %324 = vmatpush.xpose.msra.mxu0 0.0
        %325 = vmatpush.xpose.msra.mxu0 0.0
        %326 = vmatpush.xpose.msra.mxu0 0.0
        %327 = vmatpush.xpose.msra.mxu0 0.0
        %v328 = vand.u32 %v242, 4294901760
        %v329 = vsub.f32 %v242, %v328
        %330 = vmatpush.xpose.msra.mxu0 %v329
        %v331 = vand.u32 %v239, 4294901760
        %v332 = vsub.f32 %v239, %v331
        %333 = vmatpush.xpose.msra.mxu0 %v332
        %v334 = vand.u32 %v233, 4294901760
        %v335 = vsub.f32 %v233, %v334
        %336 = vmatmul.f32.gmra.mxu0 %v335
        %v337 = vpop.f32.mrf.mxu0
        %v338 = vadd.f32 %v308, %v337
        %v339 = vand.u32 %v236, 4294901760
        %v340 = vsub.f32 %v236, %v339
        %341 = vmatmul.f32.gmra.mxu0 %v340
        %v342 = vpop.f32.mrf.mxu0
        %v343 = vadd.f32 %v312, %v342
        %344 = vdwg.mxu0
        %345 = vmatpush.xpose.msra.mxu0 0.0
        %346 = vmatpush.xpose.msra.mxu0 0.0
        %347 = vmatpush.xpose.msra.mxu0 0.0
        %348 = vmatpush.xpose.msra.mxu0 0.0
        %349 = vmatpush.xpose.msra.mxu0 0.0
        %350 = vmatpush.xpose.msra.mxu0 0.0
        %351 = vmatpush.xpose.msra.mxu0 0.0
        %352 = vmatpush.xpose.msra.mxu0 0.0
        %353 = vmatpush.xpose.msra.mxu0 0.0
        %354 = vmatpush.xpose.msra.mxu0 0.0
        %355 = vmatpush.xpose.msra.mxu0 0.0
        %356 = vmatpush.xpose.msra.mxu0 0.0
        %357 = vmatpush.xpose.msra.mxu0 0.0
        %358 = vmatpush.xpose.msra.mxu0 0.0
        %v359 = vand.u32 %v242, 4294901760
        %360 = vmatpush.xpose.msra.mxu0 %v359
        %v361 = vand.u32 %v239, 4294901760
        %362 = vmatpush.xpose.msra.mxu0 %v361
        %v363 = vand.u32 %v233, 4294901760
        %v364 = vsub.f32 %v233, %v363
        %v365 = vand.u32 %v364, 4294901760
        %366 = vmatmul.f32.gmra.mxu0 %v365
        %v367 = vpop.f32.mrf.mxu0
        %v368 = vadd.f32 %v338, %v367
        %v369 = vand.u32 %v236, 4294901760
        %v370 = vsub.f32 %v236, %v369
        %v371 = vand.u32 %v370, 4294901760
        %372 = vmatmul.f32.gmra.mxu0 %v371
        %v373 = vpop.f32.mrf.mxu0
        %v374 = vadd.f32 %v343, %v373
        %375 = vdwg.mxu0
        %376 = vmatpush.xpose.msra.mxu0 0.0
        %377 = vmatpush.xpose.msra.mxu0 0.0
        %378 = vmatpush.xpose.msra.mxu0 0.0
        %379 = vmatpush.xpose.msra.mxu0 0.0
        %380 = vmatpush.xpose.msra.mxu0 0.0
        %381 = vmatpush.xpose.msra.mxu0 0.0
        %382 = vmatpush.xpose.msra.mxu0 0.0
        %383 = vmatpush.xpose.msra.mxu0 0.0
        %384 = vmatpush.xpose.msra.mxu0 0.0
        %385 = vmatpush.xpose.msra.mxu0 0.0
        %386 = vmatpush.xpose.msra.mxu0 0.0
        %387 = vmatpush.xpose.msra.mxu0 0.0
        %388 = vmatpush.xpose.msra.mxu0 0.0
        %389 = vmatpush.xpose.msra.mxu0 0.0
        %v390 = vand.u32 %v242, 4294901760
        %v391 = vsub.f32 %v242, %v390
        %v392 = vand.u32 %v391, 4294901760
        %393 = vmatpush.xpose.msra.mxu0 %v392
        %v394 = vand.u32 %v239, 4294901760
        %v395 = vsub.f32 %v239, %v394
        %v396 = vand.u32 %v395, 4294901760
        %397 = vmatpush.xpose.msra.mxu0 %v396
        %v398 = vand.u32 %v233, 4294901760
        %399 = vmatmul.f32.gmra.mxu0 %v398
        %v400 = vpop.f32.mrf.mxu0
        %v401 = vadd.f32 %v368, %v400
        %v402 = vand.u32 %v236, 4294901760
        %403 = vmatmul.f32.gmra.mxu0 %v402
        %v404 = vpop.f32.mrf.mxu0
        %v405 = vadd.f32 %v374, %v404
        %406 = vdwg.mxu0
        %407 = vmatpush.xpose.msra.mxu0 0.0
        %408 = vmatpush.xpose.msra.mxu0 0.0
        %409 = vmatpush.xpose.msra.mxu0 0.0
        %410 = vmatpush.xpose.msra.mxu0 0.0
        %411 = vmatpush.xpose.msra.mxu0 0.0
        %412 = vmatpush.xpose.msra.mxu0 0.0
        %413 = vmatpush.xpose.msra.mxu0 0.0
        %414 = vmatpush.xpose.msra.mxu0 0.0
        %415 = vmatpush.xpose.msra.mxu0 0.0
        %416 = vmatpush.xpose.msra.mxu0 0.0
        %417 = vmatpush.xpose.msra.mxu0 0.0
        %418 = vmatpush.xpose.msra.mxu0 0.0
        %419 = vmatpush.xpose.msra.mxu0 0.0
        %420 = vmatpush.xpose.msra.mxu0 0.0
        %v421 = vand.u32 %v242, 4294901760
        %422 = vmatpush.xpose.msra.mxu0 %v421
        %v423 = vand.u32 %v239, 4294901760
        %424 = vmatpush.xpose.msra.mxu0 %v423
        %v425 = vand.u32 %v233, 4294901760
        %426 = vmatmul.f32.gmra.mxu0 %v425
        %v427 = vpop.f32.mrf.mxu0
        %v428 = vadd.f32 %v401, %v427
        %v429 = vand.u32 %v236, 4294901760
        %430 = vmatmul.f32.gmra.mxu0 %v429
        %v431 = vpop.f32.mrf.mxu0
        %v432 = vadd.f32 %v405, %v431
        %433 = vdwg.mxu0
        %v434 = vmax.f32 %v428, 0.0
        %v435 = vmax.f32 %v432, 0.0
        %s436 = sld [smem:[#allocation3 + %s32]]
        %v437 = vmul.f32 %v434, -1.0
        %v438 = vmul.f32 %v435, -1.0
        %v439 = vmul.f32 %v437, 1.442695
        %v440 = vpow.pop %v439
        %v441 = vmul.f32 %v438, 1.442695
        %v442 = vpow.pop %v441
        %v443 = vstv %s436
        %v444 = vmul.f32 %v443, %v440
        %v445 = vmul.f32 %v443, %v442
        %vm446 = vcmask 130048
        %447 = vst.msk [vmem:[%s205] sm:$0xff] %vm446, %v444
        %448 = vst.msk [vmem:[%s205 + $0x8] sm:$0xff] %vm446, %v445
        %s449 = sand.u32 %s112, 1
        %s450 = scalar_lea.sflag [#allocation5], %s449
        %s451 = sand.u32 %s112, 1
        %s452 = smul.addr %s451, 16
        %s453 = scalar_lea.vmem [#allocation4], %s452
        // Predicated region
        $region29: #{tpu_custom_call.1} parent=27 // pred_check
          %p454 = pneg %p122
        $region30: #{tpu_custom_call.1} parent=27 // pred_check_branch
          %456 = sbr.rel (%p454) target = $region32
        $region31: #{tpu_custom_call.1} parent=27 // pred_region
          %s457 = smul.u32 2, %s30
          %459 = vsyncadd %s450, 0
          %s460 = sadd.s32 %s31, %s457
          %s461 = smul.addr %s32, 2
          %s462 = sadd.s32 %s460, %s461
          %s463 = smul.addr %s462, 8
          %s464 = scalar_lea.hbm %s3, %s463
          %s465 = sshll.u32 %s453, 4
          %s466 = int_to_ptr.vmem [resolvable:$true] %s465
          %s467 = sshll.u32 %s464, 4
          %s468 = int_to_ptr.hbm [resolvable:$true] %s467
          %473 = dma.vmem_to_hbm [thread:$0]  %s466, 256, %s468, %s450, 128, 128, 8
        $region32: #{tpu_custom_call.1} parent=27 // pred_fallthru
          _
      $region28: #{tpu_custom_call.1} parent=5 // pred_fallthru
        _
      %p474 = scmp.le.s32.totalorder 2, %s20
      // Predicated region
      $region33: #{tpu_custom_call.1} parent=5 // pred_check
        %p475 = pneg %p474
      $region34: #{tpu_custom_call.1} parent=5 // pred_check_branch
        %477 = sbr.rel (%p475) target = $region36
      $region35: #{tpu_custom_call.1} parent=5 // pred_region
        %s478 = ssub.s32 %s20, 2
        // Predicated region
        $region37: #{tpu_custom_call.1} parent=35 // pred_check
          %p479 = pneg %p128
        $region38: #{tpu_custom_call.1} parent=35 // pred_check_branch
          %481 = sbr.rel (%p479) target = $region40
        $region39: #{tpu_custom_call.1} parent=35 // pred_region
          %s482 = sand.u32 %s113, 1
          %s483 = scalar_lea.sflag [#allocation5], %s482
          %s484 = sand.u32 %s113, 1
          %s485 = smul.addr %s484, 16
          %s486 = scalar_lea.vmem [#allocation4], %s485
          %488 = dma.done %s483, 256
        $region40: #{tpu_custom_call.1} parent=35 // pred_fallthru
          _
      $region36: #{tpu_custom_call.1} parent=5 // pred_fallthru
        _
    $region6: #{tpu_custom_call.1} parent=1 // loop_footer
      %s24 = sadd.s32 1, %s20
    $region7: #{tpu_custom_call.1} parent=1 // loop_footer_branch
      %19 = sbr.rel target = $region3
    $region8: #{tpu_custom_call.1} parent=1 // loop_exit
      _
    %489 = vsyncpa [#allocation5], 1
    %s490 = scalar_lea.sflag [#allocation5], 1
    %491 = vsyncpa %s490, 1

</llo_original>
